<compile_context>
chip_gen: v7x
topology: tpu7x:2x2x1
jax: 0.10.0
libtpu: 0.0.40
codegen_flags: <defaults>
</compile_context>

<pallas_src>
import functools
import math

import jax
import jax.numpy as jnp
from jax.experimental import pallas as pl
from jax.experimental.pallas import tpu as pltpu


def _round_up(x, m):
    return ((x + m - 1) // m) * m


def _vmem_limit_bytes():
    # Generation-aware scoped-VMEM limit: v5e/v6e have 128 MiB physical VMEM,
    # v7x has 64 MiB.  Both code paths below need well under 16 MiB, so this
    # mostly just widens headroom on the older chips.
    try:
        cap = pltpu.get_tpu_info().vmem_capacity_bytes
    except Exception:  # conservative fallback
        cap = 64 * 1024 * 1024
    return int(min(64 * 1024 * 1024, max(32 * 1024 * 1024, cap // 2)))


# ------------------------------------------------------------------ renorm --
def _renorm(lat, code_bound):
    # torch max_norm renorm kept in torch's exact form (code_bound/(norm+1e-7))
    # for numerical parity.  The kernel is memory/DMA bound; an EUP-rsqrt
    # reformulation would move the epsilon for no measurable gain.
    norm = jnp.sqrt(jnp.sum(lat * lat, axis=-1, keepdims=True))
    scale = jnp.where(norm > code_bound, code_bound / (norm + 1e-7), 1.0)
    return lat * scale


# -------------------------------------------- Path A: one-hot gather (N<=256)
def _onehot_kernel(idx_ref, w_ref, out_ref, *, code_bound):
    # idx_ref: (TB, 1) int32 ; w_ref: (N_pad, D_pad) f32 ; out_ref: (TB, D_pad)
    tb = idx_ref.shape[0]
    n = w_ref.shape[0]
    idxs = idx_ref[...]                                         # (TB, 1)
    # NOTE: iota regenerated each step; with N <= 256 it is VPU filler under
    # the output-writeback bound, so it is not hoisted into a VMEM scratch.
    iota = jax.lax.broadcasted_iota(jnp.int32, (tb, n), 1)
    onehot = (iota == idxs).astype(jnp.float32)                 # (TB, N_pad)
    # f32 one-hot matmul == exact gather; precision pinned so the guarantee
    # does not depend on Mosaic's default (possibly bf16-pass) matmul.
    lat = jnp.dot(onehot, w_ref[...],
                  preferred_element_type=jnp.float32,
                  precision=jax.lax.Precision.HIGHEST)
    out_ref[...] = _renorm(lat, code_bound).astype(out_ref.dtype)


def _forward_onehot(flat_idx, weight, code_bound, d_pad, max_tile_rows,
                    vmem_limit):
    b = flat_idx.shape[0]
    n, d = weight.shape
    n_pad = _round_up(n, 8)

    budget = vmem_limit - 8 * 1024 * 1024
    tb = min(max_tile_rows, _round_up(b, 8))

    def vmem_need(t):
        return (2 * n_pad * d_pad * 4      # resident table: constant index_map
                                           # => DMA'd once, but pallas still
                                           # allocates 2 pipeline buffers
                + 2 * t * 4                # (t, 1) index blocks
                + 2 * t * d_pad * 4        # output tiles (double buffered)
                + 3 * t * n_pad * 4        # iota + compare mask + f32 one-hot
                + 2 * t * d_pad * 4)       # matmul result + renorm temporaries

    while tb > 8 and vmem_need(tb) > budget:
        tb = max(8, _round_up(tb // 2, 8))
    # If a single tile would cover the whole batch, split it so both v7x
    # TensorCores get a "parallel" grid step.
    if tb >= 512 and _round_up(b, tb) == tb:
        tb = _round_up(tb // 2, 8)

    b_pad = _round_up(b, tb)
    idx = flat_idx if b_pad == b else jnp.pad(flat_idx, (0, b_pad - b))
    idx = idx.reshape(b_pad, 1)
    w = weight
    if (n_pad, d_pad) != (n, d):
        w = jnp.pad(weight, ((0, n_pad - n), (0, d_pad - d)))

    return pl.pallas_call(
        functools.partial(_onehot_kernel, code_bound=code_bound),
        out_shape=jax.ShapeDtypeStruct((b_pad, d_pad), jnp.float32),
        grid=(b_pad // tb,),
        in_specs=[
            pl.BlockSpec((tb, 1), lambda i: (i, 0)),            # tile indices
            pl.BlockSpec((n_pad, d_pad), lambda i: (0, 0)),     # resident table
        ],
        out_specs=pl.BlockSpec((tb, d_pad), lambda i: (i, 0)),  # lane-dense
        compiler_params=pltpu.CompilerParams(
            dimension_semantics=("parallel",),
            vmem_limit_bytes=vmem_limit),
    )(idx, w)


# ------------------------- Path B: batched manual-DMA gather (large tables) --
def _gather_kernel(idx_ref, w_hbm, out_ref, buf, sem, *, code_bound, tb):
    # idx_ref: (B_pad,) int32 in SMEM (scalar prefetch)
    # w_hbm  : (N, D) f32, left in HBM (memory_space=pl.ANY)
    # out_ref: (TB, D) f32 VMEM block ; buf: (TB, D) f32 scratch ; sem: DMA sem
    base = pl.program_id(0) * tb

    @pl.loop(0, tb)                       # issue TB concurrent row-gather DMAs
    def _(r):
        row = idx_ref[base + r]
        pltpu.make_async_copy(w_hbm.at[row], buf.at[r], sem).start()

    @pl.loop(0, tb)                       # one matching wait per row DMA
    def _(r):
        pltpu.make_async_copy(w_hbm.at[0], buf.at[r], sem).wait()

    out_ref[...] = _renorm(buf[...], code_bound).astype(out_ref.dtype)


def _forward_gather(flat_idx, weight, code_bound, vmem_limit, max_tile_rows):
    b = flat_idx.shape[0]
    n, d = weight.shape

    budget = vmem_limit - 8 * 1024 * 1024
    tb = min(512, max_tile_rows, _round_up(b, 8))
    # gather scratch + double-buffered output block must fit comfortably.
    while tb > 8 and 3 * tb * d * 4 > budget:
        tb = max(8, _round_up(tb // 2, 8))
    # Give the second v7x TensorCore a grid step for medium/large batches.
    if tb >= 256 and _round_up(b, tb) == tb:
        tb = _round_up(tb // 2, 8)
    b_pad = _round_up(b, tb)

    idx = flat_idx if b_pad == b else jnp.pad(flat_idx, (0, b_pad - b))

    grid_spec = pltpu.PrefetchScalarGridSpec(
        num_scalar_prefetch=1,                          # indices -> SMEM
        grid=(b_pad // tb,),
        in_specs=[pl.BlockSpec(memory_space=pl.ANY)],   # table stays in HBM
        # Dense (TB, D) block; last dim equals the full array dim so no lane
        # padding of the big table is ever needed.
        out_specs=pl.BlockSpec((tb, d), lambda i, idx_ref: (i, 0)),
        scratch_shapes=[pltpu.VMEM((tb, d), jnp.float32),
                        pltpu.SemaphoreType.DMA(())],
    )
    return pl.pallas_call(
        functools.partial(_gather_kernel, code_bound=code_bound, tb=tb),
        out_shape=jax.ShapeDtypeStruct((b_pad, d), jnp.float32),
        grid_spec=grid_spec,
        compiler_params=pltpu.CompilerParams(
            dimension_semantics=("parallel",),          # rows are independent
            vmem_limit_bytes=vmem_limit),
    )(idx, weight)


# -------------------------------------------------------------- entrypoint --
def latent_codes_forward(idxs, weight, code_bound=1.0, *,
                         onehot_max_scenes=256, max_tile_rows=1024):
    """idxs: int array (any shape); weight: (num_scenes, latent_size) f32."""
    n, d = weight.shape
    orig_shape = idxs.shape
    flat = idxs.reshape(-1).astype(jnp.int32)
    # TODO(synk): torch raises on out-of-range indices; we clamp defensively.
    flat = jnp.clip(flat, 0, n - 1)
    b = flat.shape[0]
    vmem_limit = _vmem_limit_bytes()

    # Dispatch: one-hot streams the whole table and does B*N*D MXU MACs; the
    # batched DMA gather only moves B*D*4 bytes.  Beyond a few hundred rows
    # the gather wins on every generation (earliest on v5e's slower MXU), so
    # the one-hot path is reserved for tiny tables.
    d_pad = _round_up(d, 128)
    use_onehot = (n <= onehot_max_scenes
                  and 2 * _round_up(n, 8) * d_pad * 4 <= 4 * 1024 * 1024)
    if use_onehot:
        out = _forward_onehot(flat, weight, code_bound, d_pad, max_tile_rows,
                              vmem_limit)
    else:
        out = _forward_gather(flat, weight, code_bound, vmem_limit,
                              max_tile_rows)

    if out.shape != (b, d):            # slice only when padding was applied
        out = out[:b, :d]
    return out.reshape(*orig_shape, d)


# --------------------------------------------------------------- reference --
def _reference(idxs, weight, code_bound=1.0):
    lat = weight[idxs.reshape(-1).astype(jnp.int32)]
    norm = jnp.linalg.norm(lat, axis=-1, keepdims=True)
    scale = jnp.where(norm > code_bound, code_bound / (norm + 1e-7), 1.0)
    return (lat * scale).reshape(*idxs.shape, weight.shape[-1])


if __name__ == "__main__":
    key = jax.random.PRNGKey(0)
    k_w, k_idx, k_w2, k_idx2, k_w3, k_idx3 = jax.random.split(key, 6)

    # --- spec-scale check (Path A: one-hot), module defaults -----------------
    num_scenes, latent_size, code_bound, std = 16, 128, 1.0, 1.0
    weight = (std / math.sqrt(latent_size)) * jax.random.normal(
        k_w, (num_scenes, latent_size), dtype=jnp.float32)
    idxs = jax.random.randint(k_idx, (2, 9), 0, num_scenes, dtype=jnp.int32)

    out = jax.block_until_ready(
        latent_codes_forward(idxs, weight, code_bound=code_bound))
    ref = _reference(idxs, weight, code_bound=code_bound)
    assert out.shape == (2, 9, latent_size)
    assert jnp.allclose(out, ref, atol=1e-5, rtol=1e-5)

    # --- large-table check (Path B: batched SMEM-driven DMA gather) ----------
    big_scenes, small_latent = 4096, 64
    weight2 = (std / math.sqrt(small_latent)) * jax.random.normal(
        k_w2, (big_scenes, small_latent), dtype=jnp.float32)
    idxs2 = jax.random.randint(k_idx2, (3, 5), 0, big_scenes, dtype=jnp.int32)

    out2 = jax.block_until_ready(
        latent_codes_forward(idxs2, weight2, code_bound=code_bound))
    ref2 = _reference(idxs2, weight2, code_bound=code_bound)
    assert out2.shape == (3, 5, small_latent)
    assert jnp.allclose(out2, ref2, atol=1e-5, rtol=1e-5)

    # --- multi-tile Path B check (several grid steps, ragged batch) ----------
    mid_scenes, mid_latent = 1024, 128
    weight3 = (std / math.sqrt(mid_latent)) * jax.random.normal(
        k_w3, (mid_scenes, mid_latent), dtype=jnp.float32)
    idxs3 = jax.random.randint(k_idx3, (257,), 0, mid_scenes, dtype=jnp.int32)

    out3 = jax.block_until_ready(
        latent_codes_forward(idxs3, weight3, code_bound=code_bound))
    ref3 = _reference(idxs3, weight3, code_bound=code_bound)
    assert out3.shape == (257, mid_latent)
    assert jnp.allclose(out3, ref3, atol=1e-5, rtol=1e-5)

    print("KERNEL_OK")
</pallas_src>

<mosaic_0001>
module attributes {stable_mosaic.version = 11 : i64} {
  func.func @_onehot_kernel(%arg0: i32, %arg1: memref<24x1xi32, #tpu.memory_space<vmem>>, %arg2: memref<16x128xf32, #tpu.memory_space<vmem>>, %arg3: memref<24x128xf32, #tpu.memory_space<vmem>>) attributes {dimension_semantics = [#tpu.dimension_semantics<parallel>], iteration_bounds = array<i64: 1>, scalar_prefetch = 0 : i64, scratch_operands = 0 : i64, tpu.core_type = #tpu.core_type<tc>, window_params = [{transform_indices = @transform_0, window_bounds = array<i64: 24, 1>}, {pipeline_mode = #tpu.pipeline_mode<synchronous>, transform_indices = @transform_1, window_bounds = array<i64: 16, 128>}, {transform_indices = @transform_2, window_bounds = array<i64: 24, 128>}]} {
    %c0 = arith.constant 0 : index
    %c0_0 = arith.constant 0 : index
    %0 = vector.load %arg1[%c0, %c0_0] : memref<24x1xi32, #tpu.memory_space<vmem>>, vector<24x1xi32>
    %1 = tpu.iota {dimensions = array<i32: 1>} : vector<24x16xi32>
    %2 = vector.broadcast %0 : vector<24x1xi32> to vector<24x16xi32>
    %3 = arith.cmpi eq, %1, %2 : vector<24x16xi32>
    %4 = arith.extui %3 : vector<24x16xi1> to vector<24x16xi32>
    %5 = arith.sitofp %4 : vector<24x16xi32> to vector<24x16xf32>
    %c0_1 = arith.constant 0 : index
    %c0_2 = arith.constant 0 : index
    %6 = vector.load %arg2[%c0_1, %c0_2] : memref<16x128xf32, #tpu.memory_space<vmem>>, vector<16x128xf32>
    %cst = arith.constant dense<0.000000e+00> : vector<24x128xf32>
    %7 = tpu.matmul %5, %6, %cst {dimension_numbers = #tpu.dot_dimension_numbers<[1], [0], [0], [1], [0, 0, 1, 1], [], []>, precision = #tpu.contract_precision<fp32>} : vector<24x16xf32>, vector<16x128xf32>, vector<24x128xf32> -> vector<24x128xf32>
    %8 = arith.mulf %7, %7 : vector<24x128xf32>
    %cst_3 = arith.constant dense<0.000000e+00> : vector<24xf32>
    %9 = vector.multi_reduction <add>, %8, %cst_3 [1] : vector<24x128xf32> to vector<24xf32>
    %10 = vector.shape_cast %9 : vector<24xf32> to vector<24x1xf32>
    %11 = math.sqrt %10 : vector<24x1xf32>
    %cst_4 = arith.constant 1.000000e+00 : f32
    %12 = vector.broadcast %cst_4 : f32 to vector<24x1xf32>
    %13 = arith.cmpf ogt, %11, %12 : vector<24x1xf32>
    %cst_5 = arith.constant 1.000000e-07 : f32
    %14 = vector.broadcast %cst_5 : f32 to vector<24x1xf32>
    %15 = arith.addf %11, %14 : vector<24x1xf32>
    %cst_6 = arith.constant 1.000000e+00 : f32
    %16 = vector.broadcast %cst_6 : f32 to vector<24x1xf32>
    %17 = arith.divf %16, %15 : vector<24x1xf32>
    %cst_7 = arith.constant 1.000000e+00 : f32
    %18 = vector.broadcast %cst_7 : f32 to vector<24x1xf32>
    %19 = arith.select %13, %17, %18 : vector<24x1xi1>, vector<24x1xf32>
    %20 = vector.broadcast %19 : vector<24x1xf32> to vector<24x128xf32>
    %21 = arith.mulf %7, %20 : vector<24x128xf32>
    %c0_8 = arith.constant 0 : index
    %c0_9 = arith.constant 0 : index
    %22 = vector.load %arg3[%c0_8, %c0_9] : memref<24x128xf32, #tpu.memory_space<vmem>>, vector<24x128xf32>
    tpu.vector_store %arg3[%c0_8, %c0_9], %21 {strides = array<i32>} : memref<24x128xf32, #tpu.memory_space<vmem>>, vector<24x128xf32>,
    return
  }
  func.func @transform_0(%arg0: i32) -> (i32, i32) {
    %c0_i32 = arith.constant 0 : i32
    %c0_i32_0 = arith.constant 0 : i32
    return %arg0, %c0_i32 : i32, i32
  }
  func.func @transform_1(%arg0: i32) -> (i32, i32) {
    %c0_i32 = arith.constant 0 : i32
    %c0_i32_0 = arith.constant 0 : i32
    %c0_i32_1 = arith.constant 0 : i32
    return %c0_i32, %c0_i32_0 : i32, i32
  }
  func.func @transform_2(%arg0: i32) -> (i32, i32) {
    %c0_i32 = arith.constant 0 : i32
    %c0_i32_0 = arith.constant 0 : i32
    return %arg0, %c0_i32 : i32, i32
  }
}

</mosaic_0001>

<llo_original>
// kernel: tpu_custom_call.1
$region0: #{tpu_custom_call.1}
  #allocation0 [shape = 'u32[]', space=smem, size = 0x4, offset = 0x4, fixed_abs, tag = 'smem constant byte address 0x4 - core index']
  #allocation1 [shape = 'u32[144,128]{1,0:T(1,128)}', space=vmem, size = 0x12000, scoped, tag = 'internal scratch']
  %s0 = inlined_call_operand.vmem [shape: s32[24,1], index: 0, kind: input, shape index: {}]
  %s1 = inlined_call_operand.vmem [shape: f32[16,128], index: 1, kind: input, shape index: {}]
  %s2 = inlined_call_operand.hbm [shape: f32[24,128], index: 2, kind: output, shape index: {}]
  %s3 = sld [smem:[#allocation0]]
  $region18: #{tpu_custom_call.1} parent=0
    _
  %s5 = ssub.s32 1, %s3
  %s6 = scalar_select 0, %s5, %s3
  $region1: #{tpu_custom_call.1} parent=0
    #allocation2 [shape = 'u8[12288]{0}', space=vmem, size = 0x3000, scoped, tag = 'output window, operand 0, single buffered']
    #allocation3 [shape = 's32[1]{0}', space=sflag, size = 0x4, scoped, tag = 'scoped memory for tpu_custom_call.1']
    %7 = vsyncpa [#allocation3], 0
    // Predicated region
    $region2: #{tpu_custom_call.1} parent=1 // pred_check
      _
    $region3: #{tpu_custom_call.1} parent=1 // pred_check_branch
      %9 = sbr.rel (0) target = $region5
    $region4: #{tpu_custom_call.1} parent=1 // pred_region
      _
    $region5: #{tpu_custom_call.1} parent=1 // pred_fallthru
      _
    // Predicated region
    $region6: #{tpu_custom_call.1} parent=1 // pred_check
      _
    $region7: #{tpu_custom_call.1} parent=1 // pred_check_branch
      %11 = sbr.rel (0) target = $region9
    $region8: #{tpu_custom_call.1} parent=1 // pred_region
      _
    $region9: #{tpu_custom_call.1} parent=1 // pred_fallthru
      _
    %v12 = vld [vmem:[%s0] sm:$0xff]
    %v13 = vld [vmem:[%s0 + $0x8] sm:$0xff]
    %v14 = vld [vmem:[%s0 + $0x10] sm:$0xff]
    %v15 = vlaneseq
    %v16 = vand.u32 %v15, 127
    %17 = vset.pattern.permute.xlu0 0
    %18 = vperm.xlu0 %17, %v12
    %v19 = vpop.permute.xlu0 %18
    %20 = vset.pattern.permute.xlu0 0
    %21 = vperm.xlu0 %20, %v13
    %v22 = vpop.permute.xlu0 %21
    %23 = vset.pattern.permute.xlu0 0
    %24 = vperm.xlu0 %23, %v14
    %v25 = vpop.permute.xlu0 %24
    %vm26 = vcmp.eq.s32.totalorder %v16, %v19
    %vm27 = vcmp.eq.s32.totalorder %v16, %v22
    %vm28 = vcmp.eq.s32.totalorder %v16, %v25
    %v29 = vsel %vm26, 1, 0
    %v30 = vsel %vm27, 1, 0
    %v31 = vsel %vm28, 1, 0
    %v32 = vcvt.s32.f32 %v29
    %v33 = vcvt.s32.f32 %v30
    %v34 = vcvt.s32.f32 %v31
    %v35 = vld [vmem:[%s1] sm:$0xff]
    %v36 = vld [vmem:[%s1 + $0x8] sm:$0xff]
    %vm37 = vcmask 130048
    %v39 = vsel %vm37, %v32, 0
    %v42 = vsel %vm37, %v33, 0
    %v45 = vsel %vm37, %v34, 0
    %47 = vmatprep.subr.mxu0 0.0
    %v48 = vand.u32 %v35, 4294901760
    %49 = vmatpush1.msra.mxu0 %v48
    %50 = vmatprep.subr.mxu0 0.0
    %v51 = vand.u32 %v36, 4294901760
    %52 = vmatpush1.msra.mxu0 %v51
    %53 = vmatprep.subr.mxu0 0.0
    %54 = vmatpush1.msra.mxu0 0.0
    %55 = vmatprep.subr.mxu0 0.0
    %56 = vmatpush1.msra.mxu0 0.0
    %57 = vmatprep.subr.mxu0 0.0
    %58 = vmatpush1.msra.mxu0 0.0
    %59 = vmatprep.subr.mxu0 0.0
    %60 = vmatpush1.msra.mxu0 0.0
    %61 = vmatprep.subr.mxu0 0.0
    %62 = vmatpush1.msra.mxu0 0.0
    %63 = vmatprep.subr.mxu0 0.0
    %64 = vmatpush1.msra.mxu0 0.0
    %65 = vmatprep.subr.mxu0 0.0
    %66 = vmatpush1.msra.mxu0 0.0
    %67 = vmatprep.subr.mxu0 0.0
    %68 = vmatpush1.msra.mxu0 0.0
    %69 = vmatprep.subr.mxu0 0.0
    %70 = vmatpush1.msra.mxu0 0.0
    %71 = vmatprep.subr.mxu0 0.0
    %72 = vmatpush1.msra.mxu0 0.0
    %73 = vmatprep.subr.mxu0 0.0
    %74 = vmatpush1.msra.mxu0 0.0
    %75 = vmatprep.subr.mxu0 0.0
    %76 = vmatpush1.msra.mxu0 0.0
    %77 = vmatprep.subr.mxu0 0.0
    %78 = vmatpush1.msra.mxu0 0.0
    %79 = vmatprep.subr.mxu0 0.0
    %80 = vmatpush1.msra.mxu0 0.0
    %81 = vmatprep.subr.mxu0 0.0
    %82 = vmatpush1.msra.mxu0 0.0
    %83 = vmatprep.subr.mxu0 0.0
    %84 = vmatpush1.msra.mxu0 0.0
    %85 = vmatprep.subr.mxu0 0.0
    %86 = vmatpush1.msra.mxu0 0.0
    %87 = vmatprep.subr.mxu0 0.0
    %88 = vmatpush1.msra.mxu0 0.0
    %89 = vmatprep.subr.mxu0 0.0
    %90 = vmatpush1.msra.mxu0 0.0
    %91 = vmatprep.subr.mxu0 0.0
    %92 = vmatpush1.msra.mxu0 0.0
    %93 = vmatprep.subr.mxu0 0.0
    %94 = vmatpush1.msra.mxu0 0.0
    %95 = vmatprep.subr.mxu0 0.0
    %96 = vmatpush1.msra.mxu0 0.0
    %97 = vmatprep.subr.mxu0 0.0
    %98 = vmatpush1.msra.mxu0 0.0
    %99 = vmatprep.subr.mxu0 0.0
    %100 = vmatpush1.msra.mxu0 0.0
    %101 = vmatprep.subr.mxu0 0.0
    %102 = vmatpush1.msra.mxu0 0.0
    %103 = vmatprep.subr.mxu0 0.0
    %104 = vmatpush1.msra.mxu0 0.0
    %105 = vmatprep.subr.mxu0 0.0
    %106 = vmatpush1.msra.mxu0 0.0
    %107 = vmatprep.subr.mxu0 0.0
    %108 = vmatpush1.msra.mxu0 0.0
    %109 = vmatprep.subr.mxu0 0.0
    %110 = vmatpush1.msra.mxu0 0.0
    %111 = vmatprep.subr.mxu0 0.0
    %112 = vmatpush1.msra.mxu0 0.0
    %113 = vmatprep.mubr.f32.mxu0 0.0
    %v114 = vand.u32 %v39, 4294901760
    %v115 = vsub.f32 %v39, %v114
    %v116 = vand.u32 %v115, 4294901760
    %v117 = vsub.f32 %v115, %v116
    %v118 = vand.u32 %v117, 4294901760
    %119 = vmatmul.mubr.f32.gmra.mrb[0].mxu0 %v118
    %v120 = vpop.f32.mrb[0].mxu0
    %v121 = vadd.f32 0.0, %v120
    %v122 = vpop.f32.mrb[0].mxu0
    %123 = vmatprep.mubr.f32.mxu0 0.0
    %v124 = vand.u32 %v42, 4294901760
    %v125 = vsub.f32 %v42, %v124
    %v126 = vand.u32 %v125, 4294901760
    %v127 = vsub.f32 %v125, %v126
    %v128 = vand.u32 %v127, 4294901760
    %129 = vmatmul.mubr.f32.gmra.mrb[0].mxu0 %v128
    %v130 = vpop.f32.mrb[0].mxu0
    %v131 = vadd.f32 0.0, %v130
    %v132 = vpop.f32.mrb[0].mxu0
    %133 = vmatprep.mubr.f32.mxu0 0.0
    %v134 = vand.u32 %v45, 4294901760
    %v135 = vsub.f32 %v45, %v134
    %v136 = vand.u32 %v135, 4294901760
    %v137 = vsub.f32 %v135, %v136
    %v138 = vand.u32 %v137, 4294901760
    %139 = vmatmul.mubr.f32.gmra.mrb[0].mxu0 %v138
    %v140 = vpop.f32.mrb[0].mxu0
    %v141 = vadd.f32 0.0, %v140
    %v142 = vpop.f32.mrb[0].mxu0
    %143 = vdwg.mxu0
    %144 = vmatprep.subr.mxu0 0.0
    %v145 = vand.u32 %v35, 4294901760
    %v146 = vsub.f32 %v35, %v145
    %v147 = vand.u32 %v146, 4294901760
    %v148 = vsub.f32 %v146, %v147
    %v149 = vand.u32 %v148, 4294901760
    %150 = vmatpush1.msra.mxu0 %v149
    %151 = vmatprep.subr.mxu0 0.0
    %v152 = vand.u32 %v36, 4294901760
    %v153 = vsub.f32 %v36, %v152
    %v154 = vand.u32 %v153, 4294901760
    %v155 = vsub.f32 %v153, %v154
    %v156 = vand.u32 %v155, 4294901760
    %157 = vmatpush1.msra.mxu0 %v156
    %158 = vmatprep.subr.mxu0 0.0
    %159 = vmatpush1.msra.mxu0 0.0
    %160 = vmatprep.subr.mxu0 0.0
    %161 = vmatpush1.msra.mxu0 0.0
    %162 = vmatprep.subr.mxu0 0.0
    %163 = vmatpush1.msra.mxu0 0.0
    %164 = vmatprep.subr.mxu0 0.0
    %165 = vmatpush1.msra.mxu0 0.0
    %166 = vmatprep.subr.mxu0 0.0
    %167 = vmatpush1.msra.mxu0 0.0
    %168 = vmatprep.subr.mxu0 0.0
    %169 = vmatpush1.msra.mxu0 0.0
    %170 = vmatprep.subr.mxu0 0.0
    %171 = vmatpush1.msra.mxu0 0.0
    %172 = vmatprep.subr.mxu0 0.0
    %173 = vmatpush1.msra.mxu0 0.0
    %174 = vmatprep.subr.mxu0 0.0
    %175 = vmatpush1.msra.mxu0 0.0
    %176 = vmatprep.subr.mxu0 0.0
    %177 = vmatpush1.msra.mxu0 0.0
    %178 = vmatprep.subr.mxu0 0.0
    %179 = vmatpush1.msra.mxu0 0.0
    %180 = vmatprep.subr.mxu0 0.0
    %181 = vmatpush1.msra.mxu0 0.0
    %182 = vmatprep.subr.mxu0 0.0
    %183 = vmatpush1.msra.mxu0 0.0
    %184 = vmatprep.subr.mxu0 0.0
    %185 = vmatpush1.msra.mxu0 0.0
    %186 = vmatprep.subr.mxu0 0.0
    %187 = vmatpush1.msra.mxu0 0.0
    %188 = vmatprep.subr.mxu0 0.0
    %189 = vmatpush1.msra.mxu0 0.0
    %190 = vmatprep.subr.mxu0 0.0
    %191 = vmatpush1.msra.mxu0 0.0
    %192 = vmatprep.subr.mxu0 0.0
    %193 = vmatpush1.msra.mxu0 0.0
    %194 = vmatprep.subr.mxu0 0.0
    %195 = vmatpush1.msra.mxu0 0.0
    %196 = vmatprep.subr.mxu0 0.0
    %197 = vmatpush1.msra.mxu0 0.0
    %198 = vmatprep.subr.mxu0 0.0
    %199 = vmatpush1.msra.mxu0 0.0
    %200 = vmatprep.subr.mxu0 0.0
    %201 = vmatpush1.msra.mxu0 0.0
    %202 = vmatprep.subr.mxu0 0.0
    %203 = vmatpush1.msra.mxu0 0.0
    %204 = vmatprep.subr.mxu0 0.0
    %205 = vmatpush1.msra.mxu0 0.0
    %206 = vmatprep.subr.mxu0 0.0
    %207 = vmatpush1.msra.mxu0 0.0
    %208 = vmatprep.subr.mxu0 0.0
    %209 = vmatpush1.msra.mxu0 0.0
    %210 = vmatprep.subr.mxu0 0.0
    %211 = vmatpush1.msra.mxu0 0.0
    %212 = vmatprep.subr.mxu0 0.0
    %213 = vmatpush1.msra.mxu0 0.0
    %214 = vmatprep.subr.mxu0 0.0
    %215 = vmatpush1.msra.mxu0 0.0
    %216 = vmatprep.subr.mxu0 0.0
    %217 = vmatpush1.msra.mxu0 0.0
    %218 = vmatprep.mubr.f32.mxu0 0.0
    %v219 = vand.u32 %v39, 4294901760
    %220 = vmatmul.mubr.f32.gmra.mrb[0].mxu0 %v219
    %v221 = vpop.f32.mrb[0].mxu0
    %v222 = vadd.f32 %v121, %v221
    %v223 = vpop.f32.mrb[0].mxu0
    %224 = vmatprep.mubr.f32.mxu0 0.0
    %v225 = vand.u32 %v42, 4294901760
    %226 = vmatmul.mubr.f32.gmra.mrb[0].mxu0 %v225
    %v227 = vpop.f32.mrb[0].mxu0
    %v228 = vadd.f32 %v131, %v227
    %v229 = vpop.f32.mrb[0].mxu0
    %230 = vmatprep.mubr.f32.mxu0 0.0
    %v231 = vand.u32 %v45, 4294901760
    %232 = vmatmul.mubr.f32.gmra.mrb[0].mxu0 %v231
    %v233 = vpop.f32.mrb[0].mxu0
    %v234 = vadd.f32 %v141, %v233
    %v235 = vpop.f32.mrb[0].mxu0
    %236 = vdwg.mxu0
    %237 = vmatprep.subr.mxu0 0.0
    %v238 = vand.u32 %v35, 4294901760
    %v239 = vsub.f32 %v35, %v238
    %240 = vmatpush1.msra.mxu0 %v239
    %241 = vmatprep.subr.mxu0 0.0
    %v242 = vand.u32 %v36, 4294901760
    %v243 = vsub.f32 %v36, %v242
    %244 = vmatpush1.msra.mxu0 %v243
    %245 = vmatprep.subr.mxu0 0.0
    %246 = vmatpush1.msra.mxu0 0.0
    %247 = vmatprep.subr.mxu0 0.0
    %248 = vmatpush1.msra.mxu0 0.0
    %249 = vmatprep.subr.mxu0 0.0
    %250 = vmatpush1.msra.mxu0 0.0
    %251 = vmatprep.subr.mxu0 0.0
    %252 = vmatpush1.msra.mxu0 0.0
    %253 = vmatprep.subr.mxu0 0.0
    %254 = vmatpush1.msra.mxu0 0.0
    %255 = vmatprep.subr.mxu0 0.0
    %256 = vmatpush1.msra.mxu0 0.0
    %257 = vmatprep.subr.mxu0 0.0
    %258 = vmatpush1.msra.mxu0 0.0
    %259 = vmatprep.subr.mxu0 0.0
    %260 = vmatpush1.msra.mxu0 0.0
    %261 = vmatprep.subr.mxu0 0.0
    %262 = vmatpush1.msra.mxu0 0.0
    %263 = vmatprep.subr.mxu0 0.0
    %264 = vmatpush1.msra.mxu0 0.0
    %265 = vmatprep.subr.mxu0 0.0
    %266 = vmatpush1.msra.mxu0 0.0
    %267 = vmatprep.subr.mxu0 0.0
    %268 = vmatpush1.msra.mxu0 0.0
    %269 = vmatprep.subr.mxu0 0.0
    %270 = vmatpush1.msra.mxu0 0.0
    %271 = vmatprep.subr.mxu0 0.0
    %272 = vmatpush1.msra.mxu0 0.0
    %273 = vmatprep.subr.mxu0 0.0
    %274 = vmatpush1.msra.mxu0 0.0
    %275 = vmatprep.subr.mxu0 0.0
    %276 = vmatpush1.msra.mxu0 0.0
    %277 = vmatprep.subr.mxu0 0.0
    %278 = vmatpush1.msra.mxu0 0.0
    %279 = vmatprep.subr.mxu0 0.0
    %280 = vmatpush1.msra.mxu0 0.0
    %281 = vmatprep.subr.mxu0 0.0
    %282 = vmatpush1.msra.mxu0 0.0
    %283 = vmatprep.subr.mxu0 0.0
    %284 = vmatpush1.msra.mxu0 0.0
    %285 = vmatprep.subr.mxu0 0.0
    %286 = vmatpush1.msra.mxu0 0.0
    %287 = vmatprep.subr.mxu0 0.0
    %288 = vmatpush1.msra.mxu0 0.0
    %289 = vmatprep.subr.mxu0 0.0
    %290 = vmatpush1.msra.mxu0 0.0
    %291 = vmatprep.subr.mxu0 0.0
    %292 = vmatpush1.msra.mxu0 0.0
    %293 = vmatprep.subr.mxu0 0.0
    %294 = vmatpush1.msra.mxu0 0.0
    %295 = vmatprep.subr.mxu0 0.0
    %296 = vmatpush1.msra.mxu0 0.0
    %297 = vmatprep.subr.mxu0 0.0
    %298 = vmatpush1.msra.mxu0 0.0
    %299 = vmatprep.subr.mxu0 0.0
    %300 = vmatpush1.msra.mxu0 0.0
    %301 = vmatprep.subr.mxu0 0.0
    %302 = vmatpush1.msra.mxu0 0.0
    %303 = vmatprep.subr.mxu0 0.0
    %304 = vmatpush1.msra.mxu0 0.0
    %305 = vmatprep.mubr.f32.mxu0 0.0
    %v306 = vand.u32 %v39, 4294901760
    %v307 = vsub.f32 %v39, %v306
    %308 = vmatmul.mubr.f32.gmra.mrb[0].mxu0 %v307
    %v309 = vpop.f32.mrb[0].mxu0
    %v310 = vadd.f32 %v222, %v309
    %v311 = vpop.f32.mrb[0].mxu0
    %312 = vmatprep.mubr.f32.mxu0 0.0
    %v313 = vand.u32 %v42, 4294901760
    %v314 = vsub.f32 %v42, %v313
    %315 = vmatmul.mubr.f32.gmra.mrb[0].mxu0 %v314
    %v316 = vpop.f32.mrb[0].mxu0
    %v317 = vadd.f32 %v228, %v316
    %v318 = vpop.f32.mrb[0].mxu0
    %319 = vmatprep.mubr.f32.mxu0 0.0
    %v320 = vand.u32 %v45, 4294901760
    %v321 = vsub.f32 %v45, %v320
    %322 = vmatmul.mubr.f32.gmra.mrb[0].mxu0 %v321
    %v323 = vpop.f32.mrb[0].mxu0
    %v324 = vadd.f32 %v234, %v323
    %v325 = vpop.f32.mrb[0].mxu0
    %326 = vdwg.mxu0
    %327 = vmatprep.subr.mxu0 0.0
    %v328 = vand.u32 %v35, 4294901760
    %329 = vmatpush1.msra.mxu0 %v328
    %330 = vmatprep.subr.mxu0 0.0
    %v331 = vand.u32 %v36, 4294901760
    %332 = vmatpush1.msra.mxu0 %v331
    %333 = vmatprep.subr.mxu0 0.0
    %334 = vmatpush1.msra.mxu0 0.0
    %335 = vmatprep.subr.mxu0 0.0
    %336 = vmatpush1.msra.mxu0 0.0
    %337 = vmatprep.subr.mxu0 0.0
    %338 = vmatpush1.msra.mxu0 0.0
    %339 = vmatprep.subr.mxu0 0.0
    %340 = vmatpush1.msra.mxu0 0.0
    %341 = vmatprep.subr.mxu0 0.0
    %342 = vmatpush1.msra.mxu0 0.0
    %343 = vmatprep.subr.mxu0 0.0
    %344 = vmatpush1.msra.mxu0 0.0
    %345 = vmatprep.subr.mxu0 0.0
    %346 = vmatpush1.msra.mxu0 0.0
    %347 = vmatprep.subr.mxu0 0.0
    %348 = vmatpush1.msra.mxu0 0.0
    %349 = vmatprep.subr.mxu0 0.0
    %350 = vmatpush1.msra.mxu0 0.0
    %351 = vmatprep.subr.mxu0 0.0
    %352 = vmatpush1.msra.mxu0 0.0
    %353 = vmatprep.subr.mxu0 0.0
    %354 = vmatpush1.msra.mxu0 0.0
    %355 = vmatprep.subr.mxu0 0.0
    %356 = vmatpush1.msra.mxu0 0.0
    %357 = vmatprep.subr.mxu0 0.0
    %358 = vmatpush1.msra.mxu0 0.0
    %359 = vmatprep.subr.mxu0 0.0
    %360 = vmatpush1.msra.mxu0 0.0
    %361 = vmatprep.subr.mxu0 0.0
    %362 = vmatpush1.msra.mxu0 0.0
    %363 = vmatprep.subr.mxu0 0.0
    %364 = vmatpush1.msra.mxu0 0.0
    %365 = vmatprep.subr.mxu0 0.0
    %366 = vmatpush1.msra.mxu0 0.0
    %367 = vmatprep.subr.mxu0 0.0
    %368 = vmatpush1.msra.mxu0 0.0
    %369 = vmatprep.subr.mxu0 0.0
    %370 = vmatpush1.msra.mxu0 0.0
    %371 = vmatprep.subr.mxu0 0.0
    %372 = vmatpush1.msra.mxu0 0.0
    %373 = vmatprep.subr.mxu0 0.0
    %374 = vmatpush1.msra.mxu0 0.0
    %375 = vmatprep.subr.mxu0 0.0
    %376 = vmatpush1.msra.mxu0 0.0
    %377 = vmatprep.subr.mxu0 0.0
    %378 = vmatpush1.msra.mxu0 0.0
    %379 = vmatprep.subr.mxu0 0.0
    %380 = vmatpush1.msra.mxu0 0.0
    %381 = vmatprep.subr.mxu0 0.0
    %382 = vmatpush1.msra.mxu0 0.0
    %383 = vmatprep.subr.mxu0 0.0
    %384 = vmatpush1.msra.mxu0 0.0
    %385 = vmatprep.subr.mxu0 0.0
    %386 = vmatpush1.msra.mxu0 0.0
    %387 = vmatprep.subr.mxu0 0.0
    %388 = vmatpush1.msra.mxu0 0.0
    %389 = vmatprep.subr.mxu0 0.0
    %390 = vmatpush1.msra.mxu0 0.0
    %391 = vmatprep.subr.mxu0 0.0
    %392 = vmatpush1.msra.mxu0 0.0
    %393 = vmatprep.mubr.f32.mxu0 0.0
    %v394 = vand.u32 %v39, 4294901760
    %v395 = vsub.f32 %v39, %v394
    %v396 = vand.u32 %v395, 4294901760
    %397 = vmatmul.mubr.f32.gmra.mrb[0].mxu0 %v396
    %v398 = vpop.f32.mrb[0].mxu0
    %v399 = vadd.f32 %v310, %v398
    %v400 = vpop.f32.mrb[0].mxu0
    %401 = vmatprep.mubr.f32.mxu0 0.0
    %v402 = vand.u32 %v42, 4294901760
    %v403 = vsub.f32 %v42, %v402
    %v404 = vand.u32 %v403, 4294901760
    %405 = vmatmul.mubr.f32.gmra.mrb[0].mxu0 %v404
    %v406 = vpop.f32.mrb[0].mxu0
    %v407 = vadd.f32 %v317, %v406
    %v408 = vpop.f32.mrb[0].mxu0
    %409 = vmatprep.mubr.f32.mxu0 0.0
    %v410 = vand.u32 %v45, 4294901760
    %v411 = vsub.f32 %v45, %v410
    %v412 = vand.u32 %v411, 4294901760
    %413 = vmatmul.mubr.f32.gmra.mrb[0].mxu0 %v412
    %v414 = vpop.f32.mrb[0].mxu0
    %v415 = vadd.f32 %v324, %v414
    %v416 = vpop.f32.mrb[0].mxu0
    %417 = vdwg.mxu0
    %418 = vmatprep.subr.mxu0 0.0
    %v419 = vand.u32 %v35, 4294901760
    %v420 = vsub.f32 %v35, %v419
    %v421 = vand.u32 %v420, 4294901760
    %422 = vmatpush1.msra.mxu0 %v421
    %423 = vmatprep.subr.mxu0 0.0
    %v424 = vand.u32 %v36, 4294901760
    %v425 = vsub.f32 %v36, %v424
    %v426 = vand.u32 %v425, 4294901760
    %427 = vmatpush1.msra.mxu0 %v426
    %428 = vmatprep.subr.mxu0 0.0
    %429 = vmatpush1.msra.mxu0 0.0
    %430 = vmatprep.subr.mxu0 0.0
    %431 = vmatpush1.msra.mxu0 0.0
    %432 = vmatprep.subr.mxu0 0.0
    %433 = vmatpush1.msra.mxu0 0.0
    %434 = vmatprep.subr.mxu0 0.0
    %435 = vmatpush1.msra.mxu0 0.0
    %436 = vmatprep.subr.mxu0 0.0
    %437 = vmatpush1.msra.mxu0 0.0
    %438 = vmatprep.subr.mxu0 0.0
    %439 = vmatpush1.msra.mxu0 0.0
    %440 = vmatprep.subr.mxu0 0.0
    %441 = vmatpush1.msra.mxu0 0.0
    %442 = vmatprep.subr.mxu0 0.0
    %443 = vmatpush1.msra.mxu0 0.0
    %444 = vmatprep.subr.mxu0 0.0
    %445 = vmatpush1.msra.mxu0 0.0
    %446 = vmatprep.subr.mxu0 0.0
    %447 = vmatpush1.msra.mxu0 0.0
    %448 = vmatprep.subr.mxu0 0.0
    %449 = vmatpush1.msra.mxu0 0.0
    %450 = vmatprep.subr.mxu0 0.0
    %451 = vmatpush1.msra.mxu0 0.0
    %452 = vmatprep.subr.mxu0 0.0
    %453 = vmatpush1.msra.mxu0 0.0
    %454 = vmatprep.subr.mxu0 0.0
    %455 = vmatpush1.msra.mxu0 0.0
    %456 = vmatprep.subr.mxu0 0.0
    %457 = vmatpush1.msra.mxu0 0.0
    %458 = vmatprep.subr.mxu0 0.0
    %459 = vmatpush1.msra.mxu0 0.0
    %460 = vmatprep.subr.mxu0 0.0
    %461 = vmatpush1.msra.mxu0 0.0
    %462 = vmatprep.subr.mxu0 0.0
    %463 = vmatpush1.msra.mxu0 0.0
    %464 = vmatprep.subr.mxu0 0.0
    %465 = vmatpush1.msra.mxu0 0.0
    %466 = vmatprep.subr.mxu0 0.0
    %467 = vmatpush1.msra.mxu0 0.0
    %468 = vmatprep.subr.mxu0 0.0
    %469 = vmatpush1.msra.mxu0 0.0
    %470 = vmatprep.subr.mxu0 0.0
    %471 = vmatpush1.msra.mxu0 0.0
    %472 = vmatprep.subr.mxu0 0.0
    %473 = vmatpush1.msra.mxu0 0.0
    %474 = vmatprep.subr.mxu0 0.0
    %475 = vmatpush1.msra.mxu0 0.0
    %476 = vmatprep.subr.mxu0 0.0
    %477 = vmatpush1.msra.mxu0 0.0
    %478 = vmatprep.subr.mxu0 0.0
    %479 = vmatpush1.msra.mxu0 0.0
    %480 = vmatprep.subr.mxu0 0.0
    %481 = vmatpush1.msra.mxu0 0.0
    %482 = vmatprep.subr.mxu0 0.0
    %483 = vmatpush1.msra.mxu0 0.0
    %484 = vmatprep.subr.mxu0 0.0
    %485 = vmatpush1.msra.mxu0 0.0
    %486 = vmatprep.subr.mxu0 0.0
    %487 = vmatpush1.msra.mxu0 0.0
    %488 = vmatprep.mubr.f32.mxu0 0.0
    %v489 = vand.u32 %v39, 4294901760
    %490 = vmatmul.mubr.f32.gmra.mrb[0].mxu0 %v489
    %v491 = vpop.f32.mrb[0].mxu0
    %v492 = vadd.f32 %v399, %v491
    %v493 = vpop.f32.mrb[0].mxu0
    %494 = vmatprep.mubr.f32.mxu0 0.0
    %v495 = vand.u32 %v42, 4294901760
    %496 = vmatmul.mubr.f32.gmra.mrb[0].mxu0 %v495
    %v497 = vpop.f32.mrb[0].mxu0
    %v498 = vadd.f32 %v407, %v497
    %v499 = vpop.f32.mrb[0].mxu0
    %500 = vmatprep.mubr.f32.mxu0 0.0
    %v501 = vand.u32 %v45, 4294901760
    %502 = vmatmul.mubr.f32.gmra.mrb[0].mxu0 %v501
    %v503 = vpop.f32.mrb[0].mxu0
    %v504 = vadd.f32 %v415, %v503
    %v505 = vpop.f32.mrb[0].mxu0
    %506 = vdwg.mxu0
    %507 = vmatprep.subr.mxu0 0.0
    %v508 = vand.u32 %v35, 4294901760
    %509 = vmatpush1.msra.mxu0 %v508
    %510 = vmatprep.subr.mxu0 0.0
    %v511 = vand.u32 %v36, 4294901760
    %512 = vmatpush1.msra.mxu0 %v511
    %513 = vmatprep.subr.mxu0 0.0
    %514 = vmatpush1.msra.mxu0 0.0
    %515 = vmatprep.subr.mxu0 0.0
    %516 = vmatpush1.msra.mxu0 0.0
    %517 = vmatprep.subr.mxu0 0.0
    %518 = vmatpush1.msra.mxu0 0.0
    %519 = vmatprep.subr.mxu0 0.0
    %520 = vmatpush1.msra.mxu0 0.0
    %521 = vmatprep.subr.mxu0 0.0
    %522 = vmatpush1.msra.mxu0 0.0
    %523 = vmatprep.subr.mxu0 0.0
    %524 = vmatpush1.msra.mxu0 0.0
    %525 = vmatprep.subr.mxu0 0.0
    %526 = vmatpush1.msra.mxu0 0.0
    %527 = vmatprep.subr.mxu0 0.0
    %528 = vmatpush1.msra.mxu0 0.0
    %529 = vmatprep.subr.mxu0 0.0
    %530 = vmatpush1.msra.mxu0 0.0
    %531 = vmatprep.subr.mxu0 0.0
    %532 = vmatpush1.msra.mxu0 0.0
    %533 = vmatprep.subr.mxu0 0.0
    %534 = vmatpush1.msra.mxu0 0.0
    %535 = vmatprep.subr.mxu0 0.0
    %536 = vmatpush1.msra.mxu0 0.0
    %537 = vmatprep.subr.mxu0 0.0
    %538 = vmatpush1.msra.mxu0 0.0
    %539 = vmatprep.subr.mxu0 0.0
    %540 = vmatpush1.msra.mxu0 0.0
    %541 = vmatprep.subr.mxu0 0.0
    %542 = vmatpush1.msra.mxu0 0.0
    %543 = vmatprep.subr.mxu0 0.0
    %544 = vmatpush1.msra.mxu0 0.0
    %545 = vmatprep.subr.mxu0 0.0
    %546 = vmatpush1.msra.mxu0 0.0
    %547 = vmatprep.subr.mxu0 0.0
    %548 = vmatpush1.msra.mxu0 0.0
    %549 = vmatprep.subr.mxu0 0.0
    %550 = vmatpush1.msra.mxu0 0.0
    %551 = vmatprep.subr.mxu0 0.0
    %552 = vmatpush1.msra.mxu0 0.0
    %553 = vmatprep.subr.mxu0 0.0
    %554 = vmatpush1.msra.mxu0 0.0
    %555 = vmatprep.subr.mxu0 0.0
    %556 = vmatpush1.msra.mxu0 0.0
    %557 = vmatprep.subr.mxu0 0.0
    %558 = vmatpush1.msra.mxu0 0.0
    %559 = vmatprep.subr.mxu0 0.0
    %560 = vmatpush1.msra.mxu0 0.0
    %561 = vmatprep.subr.mxu0 0.0
    %562 = vmatpush1.msra.mxu0 0.0
    %563 = vmatprep.subr.mxu0 0.0
    %564 = vmatpush1.msra.mxu0 0.0
    %565 = vmatprep.subr.mxu0 0.0
    %566 = vmatpush1.msra.mxu0 0.0
    %567 = vmatprep.subr.mxu0 0.0
    %568 = vmatpush1.msra.mxu0 0.0
    %569 = vmatprep.subr.mxu0 0.0
    %570 = vmatpush1.msra.mxu0 0.0
    %571 = vmatprep.subr.mxu0 0.0
    %572 = vmatpush1.msra.mxu0 0.0
    %573 = vmatprep.mubr.f32.mxu0 0.0
    %v574 = vand.u32 %v39, 4294901760
    %575 = vmatmul.mubr.f32.gmra.mrb[0].mxu0 %v574
    %v576 = vpop.f32.mrb[0].mxu0
    %v577 = vadd.f32 %v492, %v576
    %v578 = vpop.f32.mrb[0].mxu0
    %579 = vmatprep.mubr.f32.mxu0 0.0
    %v580 = vand.u32 %v42, 4294901760
    %581 = vmatmul.mubr.f32.gmra.mrb[0].mxu0 %v580
    %v582 = vpop.f32.mrb[0].mxu0
    %v583 = vadd.f32 %v498, %v582
    %v584 = vpop.f32.mrb[0].mxu0
    %585 = vmatprep.mubr.f32.mxu0 0.0
    %v586 = vand.u32 %v45, 4294901760
    %587 = vmatmul.mubr.f32.gmra.mrb[0].mxu0 %v586
    %v588 = vpop.f32.mrb[0].mxu0
    %v589 = vadd.f32 %v504, %v588
    %v590 = vpop.f32.mrb[0].mxu0
    %591 = vdwg.mxu0
    %v592 = vmul.f32 %v577, %v577
    %v593 = vmul.f32 %v583, %v583
    %v594 = vmul.f32 %v589, %v589
    %595 = vadd.xlane.f32.xlu0 %v592
    %v596 = vpop.xlane.xlu0 %595
    %597 = vadd.xlane.f32.xlu0 %v593
    %v598 = vpop.xlane.xlu0 %597
    %599 = vadd.xlane.f32.xlu0 %v594
    %v600 = vpop.xlane.xlu0 %599
    %v601 = vrsqrt.pop %v596
    %v602 = vmul.f32 %v596, %v601
    %vm603 = vcmp.eq.f32.partialorder %v596, inf
    %v604 = vsel %vm603, %v596, %v602
    %vm605 = vcmp.eq.f32.partialorder %v596, 0.0
    %v606 = vand.u32 %v596, 2147483648
    %v607 = vsel %vm605, %v606, %v604
    %v608 = vrsqrt.pop %v598
    %v609 = vmul.f32 %v598, %v608
    %vm610 = vcmp.eq.f32.partialorder %v598, inf
    %v611 = vsel %vm610, %v598, %v609
    %vm612 = vcmp.eq.f32.partialorder %v598, 0.0
    %v613 = vand.u32 %v598, 2147483648
    %v614 = vsel %vm612, %v613, %v611
    %v615 = vrsqrt.pop %v600
    %v616 = vmul.f32 %v600, %v615
    %vm617 = vcmp.eq.f32.partialorder %v600, inf
    %v618 = vsel %vm617, %v600, %v616
    %vm619 = vcmp.eq.f32.partialorder %v600, 0.0
    %v620 = vand.u32 %v600, 2147483648
    %v621 = vsel %vm619, %v620, %v618
    %vm622 = vcmp.gt.f32.partialorder %v607, 1.0
    %vm623 = vcmp.gt.f32.partialorder %v614, 1.0
    %vm624 = vcmp.gt.f32.partialorder %v621, 1.0
    %v625 = vadd.f32 %v607, 1e-07
    %v626 = vadd.f32 %v614, 1e-07
    %v627 = vadd.f32 %v621, 1e-07
    %v628 = vrcp.pop %v625
    %v629 = vmul.f32 1.0, %v628
    %v630 = vrcp.pop %v626
    %v631 = vmul.f32 1.0, %v630
    %v632 = vrcp.pop %v627
    %v633 = vmul.f32 1.0, %v632
    %v634 = vsel %vm622, %v629, 1.0
    %v635 = vsel %vm623, %v631, 1.0
    %v636 = vsel %vm624, %v633, 1.0
    %v637 = vmul.f32 %v577, %v634
    %v638 = vmul.f32 %v583, %v635
    %v639 = vmul.f32 %v589, %v636
    %640 = vst [vmem:[#allocation2] sm:$0xff] %v637
    %641 = vst [vmem:[#allocation2 + $0x8] sm:$0xff] %v638
    %642 = vst [vmem:[#allocation2 + $0x10] sm:$0xff] %v639
    // Predicated region
    $region10: #{tpu_custom_call.1} parent=1 // pred_check
      _
    $region11: #{tpu_custom_call.1} parent=1 // pred_check_branch
      %644 = sbr.rel (0) target = $region13
    $region12: #{tpu_custom_call.1} parent=1 // pred_region
      %s646 = ssub.s32 384, 384
      %647 = vsyncadd [#allocation3], %s646
      %s648 = sshll.u32 [#allocation2], 4
      %s649 = int_to_ptr.vmem [resolvable:$true] %s648
      %654 = dma.vmem_to_hbm [thread:$0]  %s649, 384, %s2, [#allocation3], 128, 128, 8
    $region13: #{tpu_custom_call.1} parent=1 // pred_fallthru
      _
    // Predicated region
    $region14: #{tpu_custom_call.1} parent=1 // pred_check
      _
    $region15: #{tpu_custom_call.1} parent=1 // pred_check_branch
      %656 = sbr.rel (0) target = $region17
    $region16: #{tpu_custom_call.1} parent=1 // pred_region
      %657 = dma.done [#allocation3], 384
    $region17: #{tpu_custom_call.1} parent=1 // pred_fallthru
      _
    %658 = vsyncpa [#allocation3], 1

</llo_original>
